<compile_context>
chip_gen: v7x
topology: tpu7x:2x2x1
jax: 0.10.0
libtpu: 0.0.40
codegen_flags: <defaults>
</compile_context>

<pallas_src>
import functools

import jax
import jax.numpy as jnp
import numpy as np
from jax.experimental import pallas as pl
from jax.experimental.pallas import tpu as pltpu


# ---------------------------------------------------------------------------
# Pallas kernel: fused tube embedding + spatio-temporal max pool + pos embedding
# ---------------------------------------------------------------------------
def _encoder_fused_kernel(g_ref, xyzt_ref, wt_ref, wp_ref, bp_ref, out_ref, *,
                          tkk, npts, relu):
    """One (batch, anchor-frame) tile.

    g_ref:    [TK*K*Np, Cg]  grouped (xyz/t displacement ++ point feature) rows
    xyzt_ref: [Np, 4]        anchor xyz + 1-based frame index (f32)
    wt_ref:   [Cg, Dp]       concat(conv_d, conv_f) weights, lane-padded columns
    wp_ref:   [4, Dp]        pos_embedding weight, lane-padded columns (f32)
    bp_ref:   [1, Dp]        pos_embedding bias, lane-padded (f32)
    out_ref:  [Np, Dp]       final embedding tile (f32)
    """
    # Single large MXU matmul (M = TK*K*Np), f32 accumulation.
    x = jnp.dot(g_ref[...], wt_ref[...], preferred_element_type=jnp.float32)
    # Spatial (K) + temporal (TK) max pooling: elementwise max over leading axis.
    feat = jnp.max(x.reshape(tkk, npts, x.shape[-1]), axis=0)          # [Np, Dp]
    # Positional embedding (1x1 Conv1d == matmul) + bias + residual add (+ReLU).
    pos = jnp.dot(xyzt_ref[...], wp_ref[...], preferred_element_type=jnp.float32)
    emb = feat + pos + bp_ref[...]
    if relu:
        emb = jnp.maximum(emb, 0.0)
    out_ref[...] = emb


# ---------------------------------------------------------------------------
# Glue (plain JAX): FPS, ball query, grouping — data-dependent gathers.
# ---------------------------------------------------------------------------
def furthest_point_sample(xyz, nsample):
    """xyz: [..., N, 3] -> [..., nsample] int32; starts at point 0 (pointnet2)."""
    def one(pts):
        N = pts.shape[0]

        def body(i, carry):
            idxs, dists, last = carry
            d = jnp.sum((pts - pts[last][None, :]) ** 2, axis=-1)
            dists = jnp.minimum(dists, d)
            nxt = jnp.argmax(dists).astype(jnp.int32)
            return idxs.at[i].set(nxt), dists, nxt

        idxs0 = jnp.zeros((nsample,), jnp.int32)
        dists0 = jnp.full((N,), 1e10, jnp.float32)
        idxs, _, _ = jax.lax.fori_loop(1, nsample, body, (idxs0, dists0, jnp.int32(0)))
        return idxs

    flat = xyz.reshape((-1,) + xyz.shape[-2:])
    out = jax.vmap(one)(flat)
    return out.reshape(xyz.shape[:-2] + (nsample,))


def ball_query(radius, k, neighbor_xyz, anchor_xyz):
    """pointnet2 ball query: neighbor [B,N,3], anchor [B,M,3] -> idx [B,M,k].

    First k in-radius indices (ascending original index); slots beyond the number
    of in-radius points are filled with the first in-radius index (0 if none).
    Implemented with a single top_k instead of k argmax passes.
    """
    N = neighbor_xyz.shape[1]
    d2 = jnp.sum((anchor_xyz[:, :, None, :] - neighbor_xyz[:, None, :, :]) ** 2, axis=-1)
    within = d2 < radius * radius                                     # [B, M, N]
    key = jnp.where(within, jnp.arange(N, dtype=jnp.int32), jnp.int32(N))
    neg_vals, _ = jax.lax.top_k(-key, k)                              # k smallest keys
    idx = (-neg_vals).astype(jnp.int32)                               # ascending index
    first = idx[..., :1]
    fill = jnp.where(first < N, first, 0)
    return jnp.where(idx < N, idx, fill)


def _group(points, idx):
    """points: [B, N, C], idx: [B, M, K] -> [B, M, K, C]."""
    B, M, K = idx.shape
    C = points.shape[-1]
    flat = jnp.take_along_axis(points, idx.reshape(B, M * K, 1), axis=1)
    return flat.reshape(B, M, K, C)


def _prepare_groups(inp, *, radius, nsamples, spatial_stride,
                    temporal_kernel_size, temporal_stride):
    """Build grouped (displacement ++ feature) tensor and anchor xyzt coords."""
    B, T, N, _ = inp.shape
    xyz = inp[..., :3]
    # The PyTorch Encoder feeds input[..., 2:3] (the z coordinate) as the feature.
    feat = inp[..., 2:3]
    Cin = feat.shape[-1]

    # temporal_padding=[1, 1], replicate mode
    xyz_p = jnp.concatenate([xyz[:, :1], xyz, xyz[:, -1:]], axis=1)
    feat_p = jnp.concatenate([feat[:, :1], feat, feat[:, -1:]], axis=1)
    Tp = T + 2
    half = temporal_kernel_size // 2
    assert temporal_kernel_size % 2 == 1
    assert (Tp - temporal_kernel_size) % temporal_stride == 0
    Np = N // spatial_stride
    K = nsamples
    TK = temporal_kernel_size

    anchor_frames = np.arange(half, Tp - half, temporal_stride)       # [T']
    Tprime = len(anchor_frames)
    offs = np.arange(-half, half + 1)                                 # [TK]
    frame_ids = anchor_frames[:, None] + offs[None, :]                # [T', TK]

    # FPS on all anchor frames at once (batched over B*T').
    anchor_xyz_frames = xyz_p[:, anchor_frames]                       # [B, T', N, 3]
    aidx = furthest_point_sample(anchor_xyz_frames, Np)               # [B, T', Np]
    anchors = jnp.take_along_axis(anchor_xyz_frames, aidx[..., None], axis=2)  # [B,T',Np,3]

    # Ball query + grouping, batched over (B, T', TK).
    BTT = B * Tprime * TK
    nb_xyz = xyz_p[:, frame_ids].reshape(BTT, N, 3)
    nb_feat = feat_p[:, frame_ids].reshape(BTT, N, Cin)
    anc = jnp.broadcast_to(anchors[:, :, None], (B, Tprime, TK, Np, 3)).reshape(BTT, Np, 3)
    idx = ball_query(radius, K, nb_xyz, anc)                          # [BTT, Np, K]
    g_xyz = _group(nb_xyz, idx)                                       # [BTT, Np, K, 3]
    g_f = _group(nb_feat, idx)                                        # [BTT, Np, K, Cin]
    d_xyz = g_xyz - anc[:, :, None, :]
    d_t = jnp.broadcast_to(
        jnp.asarray(offs, jnp.float32)[None, None, :, None, None, None],
        (B, Tprime, TK, Np, K, 1)).reshape(BTT, Np, K, 1)
    g = jnp.concatenate([d_xyz, d_t, g_f], axis=-1)                   # [BTT, Np, K, 4+Cin]
    g = jnp.transpose(g, (0, 2, 1, 3))                                # [BTT, K, Np, 4+Cin]
    grouped = g.reshape(B, Tprime, TK, K, Np, 4 + Cin)

    tcol = jnp.broadcast_to(
        jnp.arange(1, Tprime + 1, dtype=jnp.float32)[None, :, None, None],
        (B, Tprime, Np, 1))                                           # 1-based frame index
    xyzts = jnp.concatenate([anchors, tcol], axis=-1)                 # [B, T', Np, 4]
    return grouped, xyzts, Tprime, Np


# ---------------------------------------------------------------------------
# Encoder forward (Pallas) and plain-JAX reference
# ---------------------------------------------------------------------------
def encoder_forward(inp, params, *, radius, nsamples, spatial_stride,
                    temporal_kernel_size, temporal_stride, emb_relu, dim,
                    compute_dtype=jnp.float32):
    grouped, xyzts4, Tprime, Np = _prepare_groups(
        inp, radius=radius, nsamples=nsamples, spatial_stride=spatial_stride,
        temporal_kernel_size=temporal_kernel_size, temporal_stride=temporal_stride)
    B = inp.shape[0]
    K = nsamples
    TK = temporal_kernel_size
    Cg = grouped.shape[-1]                                            # 4 + in_planes
    TKK = TK * K
    M = TKK * Np                                                      # matmul M rows

    # Lane-dense channel dim: pad weight columns to a multiple of 128; slice back.
    Dp = ((dim + 127) // 128) * 128
    pad = Dp - dim
    # operator='+': conv_f(feat) + conv_d(disp) == [disp ++ feat] @ [Wd ; Wf]
    w_tube = jnp.concatenate([params["wd"], params["wf"]], axis=0)    # [Cg, dim]
    wt = jnp.pad(w_tube, ((0, 0), (0, pad))).astype(compute_dtype)
    wp = jnp.pad(params["wpos"], ((0, 0), (0, pad)))                  # f32 epilogue
    bp = jnp.pad(params["bpos"], (0, pad)).reshape(1, Dp)

    # Flatten (TK, K, Np) into one matmul M axis; cast dominant traffic only.
    g_flat = grouped.reshape(B, Tprime, M, Cg).astype(compute_dtype)

    # NOTE(v7x): at production Np / K / dim, tile the M / Np axes into fixed-size
    # blocks and set vmem_limit_bytes; whole-slab blocks are fine at these sizes.
    out = pl.pallas_call(
        functools.partial(_encoder_fused_kernel, tkk=TKK, npts=Np, relu=emb_relu),
        out_shape=jax.ShapeDtypeStruct((B, Tprime, Np, Dp), jnp.float32),
        grid=(B, Tprime),
        in_specs=[
            pl.BlockSpec((None, None, M, Cg), lambda b, t: (b, t, 0, 0)),
            pl.BlockSpec((None, None, Np, 4), lambda b, t: (b, t, 0, 0)),
            pl.BlockSpec((Cg, Dp), lambda b, t: (0, 0)),
            pl.BlockSpec((4, Dp), lambda b, t: (0, 0)),
            pl.BlockSpec((1, Dp), lambda b, t: (0, 0)),
        ],
        out_specs=pl.BlockSpec((None, None, Np, Dp), lambda b, t: (b, t, 0, 0)),
        compiler_params=pltpu.CompilerParams(
            dimension_semantics=("parallel", "parallel")),
    )(g_flat, xyzts4, wt, wp, bp)

    return out[..., :dim].reshape(B, Tprime * Np, dim)


def encoder_reference(inp, params, *, radius, nsamples, spatial_stride,
                      temporal_kernel_size, temporal_stride, emb_relu, dim):
    grouped, xyzts4, Tprime, Np = _prepare_groups(
        inp, radius=radius, nsamples=nsamples, spatial_stride=spatial_stride,
        temporal_kernel_size=temporal_kernel_size, temporal_stride=temporal_stride)
    B = inp.shape[0]
    w_tube = jnp.concatenate([params["wd"], params["wf"]], axis=0)
    x = jnp.einsum("btikns,sd->btiknd", grouped, w_tube)
    feat = jnp.max(x, axis=(2, 3))                                    # max over (TK, K)
    feats_flat = feat.reshape(B, Tprime * Np, dim)
    xyzts_flat = xyzts4.reshape(B, Tprime * Np, 4)
    emb = xyzts_flat @ params["wpos"] + params["bpos"][None, None, :] + feats_flat
    if emb_relu:
        emb = jnp.maximum(emb, 0.0)
    return emb


if __name__ == "__main__":
    key = jax.random.PRNGKey(0)
    B, T, N = 2, 4, 32
    dim = 32
    radius, nsamples, spatial_stride = 0.5, 8, 4
    temporal_kernel_size, temporal_stride = 3, 1
    emb_relu = True
    features = 1  # in_planes: z coordinate is the single input feature channel

    k_in, k_wd, k_wf, k_wp, k_bp = jax.random.split(key, 5)
    inp = jax.random.uniform(k_in, (B, T, N, 3), jnp.float32)
    params = {
        "wd": 0.1 * jax.random.normal(k_wd, (4, dim), jnp.float32),        # conv_d weight^T
        "wf": 0.1 * jax.random.normal(k_wf, (features, dim), jnp.float32), # conv_f weight^T
        "wpos": 0.1 * jax.random.normal(k_wp, (4, dim), jnp.float32),      # pos_embedding weight^T
        "bpos": 0.1 * jax.random.normal(k_bp, (dim,), jnp.float32),        # pos_embedding bias
    }

    cfg = dict(radius=radius, nsamples=nsamples, spatial_stride=spatial_stride,
               temporal_kernel_size=temporal_kernel_size,
               temporal_stride=temporal_stride, emb_relu=emb_relu, dim=dim)

    ref = jax.block_until_ready(encoder_reference(inp, params, **cfg))

    # f32 data path: tight check.
    out = jax.block_until_ready(encoder_forward(inp, params, **cfg))
    np.testing.assert_allclose(np.asarray(out), np.asarray(ref), rtol=1e-5, atol=1e-5)
    assert out.shape == (B, T * (N // spatial_stride), dim)

    # bf16 data path (grouped tensor + tube weights), f32 accumulation: loose check.
    out_bf16 = jax.block_until_ready(
        encoder_forward(inp, params, compute_dtype=jnp.bfloat16, **cfg))
    np.testing.assert_allclose(np.asarray(out_bf16), np.asarray(ref), rtol=5e-2, atol=5e-2)

    print("KERNEL_OK")
</pallas_src>

<mosaic_0001>
module attributes {stable_mosaic.version = 11 : i64} {
  func.func @_encoder_fused_kernel(%arg0: i32, %arg1: i32, %arg2: memref<1x1x192x5xf32, #tpu.memory_space<vmem>>, %arg3: memref<1x1x8x4xf32, #tpu.memory_space<vmem>>, %arg4: memref<5x128xf32, #tpu.memory_space<vmem>>, %arg5: memref<4x128xf32, #tpu.memory_space<vmem>>, %arg6: memref<1x128xf32, #tpu.memory_space<vmem>>, %arg7: memref<1x1x8x128xf32, #tpu.memory_space<vmem>>) attributes {dimension_semantics = [#tpu.dimension_semantics<parallel>, #tpu.dimension_semantics<parallel>], iteration_bounds = array<i64: 2, 4>, scalar_prefetch = 0 : i64, scratch_operands = 0 : i64, tpu.core_type = #tpu.core_type<tc>, window_params = [{transform_indices = @transform_0, window_bounds = array<i64: 1, 1, 192, 5>}, {transform_indices = @transform_1, window_bounds = array<i64: 1, 1, 8, 4>}, {pipeline_mode = #tpu.pipeline_mode<synchronous>, transform_indices = @transform_2, window_bounds = array<i64: 5, 128>}, {pipeline_mode = #tpu.pipeline_mode<synchronous>, transform_indices = @transform_3, window_bounds = array<i64: 4, 128>}, {pipeline_mode = #tpu.pipeline_mode<synchronous>, transform_indices = @transform_4, window_bounds = array<i64: 1, 128>}, {transform_indices = @transform_5, window_bounds = array<i64: 1, 1, 8, 128>}]} {
    %c0 = arith.constant 0 : index
    %c0_0 = arith.constant 0 : index
    %c0_1 = arith.constant 0 : index
    %c0_2 = arith.constant 0 : index
    %0 = vector.load %arg2[%c0, %c0_0, %c0_1, %c0_2] : memref<1x1x192x5xf32, #tpu.memory_space<vmem>>, vector<1x1x192x5xf32>
    %1 = vector.shape_cast %0 : vector<1x1x192x5xf32> to vector<192x5xf32>
    %c0_3 = arith.constant 0 : index
    %c0_4 = arith.constant 0 : index
    %2 = vector.load %arg4[%c0_3, %c0_4] : memref<5x128xf32, #tpu.memory_space<vmem>>, vector<5x128xf32>
    %cst = arith.constant dense<0.000000e+00> : vector<192x128xf32>
    %3 = tpu.matmul %1, %2, %cst {dimension_numbers = #tpu.dot_dimension_numbers<[1], [0], [0], [1], [0, 0, 1, 1], [], []>} : vector<192x5xf32>, vector<5x128xf32>, vector<192x128xf32> -> vector<192x128xf32>
    %4 = vector.shape_cast %3 : vector<192x128xf32> to vector<24x8x128xf32>
    %cst_5 = arith.constant dense<0xFF800000> : vector<8x128xf32>
    %5 = vector.multi_reduction <maximumf>, %4, %cst_5 [0] : vector<24x8x128xf32> to vector<8x128xf32>
    %c0_6 = arith.constant 0 : index
    %c0_7 = arith.constant 0 : index
    %c0_8 = arith.constant 0 : index
    %c0_9 = arith.constant 0 : index
    %6 = vector.load %arg3[%c0_6, %c0_7, %c0_8, %c0_9] : memref<1x1x8x4xf32, #tpu.memory_space<vmem>>, vector<1x1x8x4xf32>
    %7 = vector.shape_cast %6 : vector<1x1x8x4xf32> to vector<8x4xf32>
    %c0_10 = arith.constant 0 : index
    %c0_11 = arith.constant 0 : index
    %8 = vector.load %arg5[%c0_10, %c0_11] : memref<4x128xf32, #tpu.memory_space<vmem>>, vector<4x128xf32>
    %cst_12 = arith.constant dense<0.000000e+00> : vector<8x128xf32>
    %9 = tpu.matmul %7, %8, %cst_12 {dimension_numbers = #tpu.dot_dimension_numbers<[1], [0], [0], [1], [0, 0, 1, 1], [], []>} : vector<8x4xf32>, vector<4x128xf32>, vector<8x128xf32> -> vector<8x128xf32>
    %10 = arith.addf %5, %9 : vector<8x128xf32>
    %c0_13 = arith.constant 0 : index
    %c0_14 = arith.constant 0 : index
    %11 = vector.load %arg6[%c0_13, %c0_14] : memref<1x128xf32, #tpu.memory_space<vmem>>, vector<1x128xf32>
    %12 = vector.broadcast %11 : vector<1x128xf32> to vector<8x128xf32>
    %13 = arith.addf %10, %12 : vector<8x128xf32>
    %cst_15 = arith.constant 0.000000e+00 : f32
    %14 = vector.broadcast %cst_15 : f32 to vector<8x128xf32>
    %15 = arith.maximumf %13, %14 : vector<8x128xf32>
    %c0_16 = arith.constant 0 : index
    %c0_17 = arith.constant 0 : index
    %c0_18 = arith.constant 0 : index
    %c0_19 = arith.constant 0 : index
    %16 = vector.load %arg7[%c0_16, %c0_17, %c0_18, %c0_19] : memref<1x1x8x128xf32, #tpu.memory_space<vmem>>, vector<1x1x8x128xf32>
    %17 = vector.shape_cast %16 : vector<1x1x8x128xf32> to vector<8x128xf32>
    %18 = vector.shape_cast %15 : vector<8x128xf32> to vector<1x1x8x128xf32>
    tpu.vector_store %arg7[%c0_16, %c0_17, %c0_18, %c0_19], %18 {strides = array<i32>} : memref<1x1x8x128xf32, #tpu.memory_space<vmem>>, vector<1x1x8x128xf32>,
    return
  }
  func.func @transform_0(%arg0: i32, %arg1: i32) -> (i32, i32, i32, i32) {
    %c0_i32 = arith.constant 0 : i32
    %c0_i32_0 = arith.constant 0 : i32
    %c0_i32_1 = arith.constant 0 : i32
    return %arg0, %arg1, %c0_i32, %c0_i32_0 : i32, i32, i32, i32
  }
  func.func @transform_1(%arg0: i32, %arg1: i32) -> (i32, i32, i32, i32) {
    %c0_i32 = arith.constant 0 : i32
    %c0_i32_0 = arith.constant 0 : i32
    %c0_i32_1 = arith.constant 0 : i32
    return %arg0, %arg1, %c0_i32, %c0_i32_0 : i32, i32, i32, i32
  }
  func.func @transform_2(%arg0: i32, %arg1: i32) -> (i32, i32) {
    %c0_i32 = arith.constant 0 : i32
    %c0_i32_0 = arith.constant 0 : i32
    %c0_i32_1 = arith.constant 0 : i32
    return %c0_i32, %c0_i32_0 : i32, i32
  }
  func.func @transform_3(%arg0: i32, %arg1: i32) -> (i32, i32) {
    %c0_i32 = arith.constant 0 : i32
    %c0_i32_0 = arith.constant 0 : i32
    %c0_i32_1 = arith.constant 0 : i32
    return %c0_i32, %c0_i32_0 : i32, i32
  }
  func.func @transform_4(%arg0: i32, %arg1: i32) -> (i32, i32) {
    %c0_i32 = arith.constant 0 : i32
    %c0_i32_0 = arith.constant 0 : i32
    %c0_i32_1 = arith.constant 0 : i32
    return %c0_i32, %c0_i32_0 : i32, i32
  }
  func.func @transform_5(%arg0: i32, %arg1: i32) -> (i32, i32, i32, i32) {
    %c0_i32 = arith.constant 0 : i32
    %c0_i32_0 = arith.constant 0 : i32
    %c0_i32_1 = arith.constant 0 : i32
    return %arg0, %arg1, %c0_i32, %c0_i32_0 : i32, i32, i32, i32
  }
}

</mosaic_0001>

<llo_original>
// kernel: tpu_custom_call.1
$region0: #{tpu_custom_call.1}
  #allocation0 [shape = 'u32[]', space=smem, size = 0x4, offset = 0x4, fixed_abs, tag = 'smem constant byte address 0x4 - core index']
  #allocation1 [shape = 'u32[144,128]{1,0:T(1,128)}', space=vmem, size = 0x12000, scoped, tag = 'internal scratch']
  %s0 = inlined_call_operand.vmem [shape: f32[2,4,192,5], index: 0, kind: input, shape index: {}]
  %s1 = inlined_call_operand.vmem [shape: f32[2,4,8,4], index: 1, kind: input, shape index: {}]
  %s2 = inlined_call_operand.vmem [shape: f32[5,128], index: 2, kind: input, shape index: {}]
  %s3 = inlined_call_operand.vmem [shape: f32[4,128], index: 3, kind: input, shape index: {}]
  %s4 = inlined_call_operand.vmem [shape: f32[1,128], index: 4, kind: input, shape index: {}]
  %s5 = inlined_call_operand.hbm [shape: f32[2,4,8,128], index: 5, kind: output, shape index: {}]
  %s6 = sld [smem:[#allocation0]]
  $region53: #{tpu_custom_call.1} parent=0
    _
  %s8 = ssub.s32 1, %s6
  %s9 = scalar_select 0, %s8, %s6
  $region1: #{tpu_custom_call.1} parent=0
    #allocation2 [shape = 'u8[8192]{0}', space=vmem, size = 0x2000, scoped, tag = 'output window, operand 0']
    #allocation3 [shape = 's32[2]{0}', space=sflag, size = 0x8, scoped, tag = 'scoped memory for tpu_custom_call.1']
    %10 = vsyncpa [#allocation3], 0
    %s11 = scalar_lea.sflag [#allocation3], 1
    %12 = vsyncpa %s11, 0
    loop: start=0, step=1, limit=10
    $region2: #{tpu_custom_call.1} parent=1 // loop_pre_header
      _
    $region3: #{tpu_custom_call.1} parent=1 // loop_header
      %s14 = sphi 0, %s18
      %p15 = scmp.ge.s32.totalorder %s14, 10
      %s21 = sphi 0, %s33
      %s22 = sphi 0, %s29
      %s23 = sphi 0, %s21
      %s24 = sphi 0, %s22
      %s25 = sphi 0, %s23
      %s26 = sphi 0, %s24
      %s38 = sphi 0, %s40
      %s41 = sphi 0, %s38
      %s42 = sphi 0, %s41
      %s58 = sphi 0, %s42
      %s66 = sphi 0, %s68
      %s69 = sphi 0, %s66
      %s70 = sphi 0, %s69
      %s86 = sphi 0, %s70
      %s90 = sphi 0, %s90
      %s92 = sphi 0, %s90
      %s93 = sphi 0, %s92
      %s107 = sphi 0, %s93
      %s111 = sphi 0, %s111
      %s113 = sphi 0, %s111
      %s114 = sphi 0, %s113
      %s128 = sphi 0, %s114
      %s132 = sphi 0, %s132
      %s134 = sphi 0, %s132
      %s135 = sphi 0, %s134
      %s149 = sphi 0, %s135
      %s157 = sphi 0, %s159
      %s160 = sphi 0, %s157
      %s161 = sphi 0, %s160
      %s177 = sphi 0, %s161
    $region4: #{tpu_custom_call.1} parent=1 // loop_header_branch
      %17 = sbr.rel (%p15) target = $region8
    $region5: #{tpu_custom_call.1} parent=1 // loop_body
      %s19 = ssub.s32 %s14, 1
      %s20 = ssub.s32 %s14, 2
      %s27 = sadd.s32 1, %s22
      %p28 = scmp.ge.s32.totalorder %s27, 4
      %s29 = scalar_select %p28, 0, %s27
      %s30 = sadd.s32 1, %s21
      %s31 = scalar_select %p28, %s30, %s21
      %p32 = scmp.ge.s32.totalorder %s31, 2
      %s33 = scalar_select %p32, 0, %s31
      %s34 = ssub.s32 %s21, %s33
      %s35 = ssub.s32 %s22, %s29
      %s36 = sor.u32 %s34, %s35
      %p37 = scmp.eq.s32.totalorder %s36, 0
      %s39 = sadd.s32 %s38, 1
      %s40 = scalar_select %p37, %s38, %s39
      %p43 = pneg %p37
      %p44 = scmp.eq.s32.totalorder %s14, 7
      %p45 = por %p43, %p44
      %p46 = scmp.ne.s32.totalorder %s38, %s41
      %p47 = scmp.eq.s32.totalorder %s14, 0
      %p48 = por %p46, %p47
      %p49 = scmp.ne.s32.totalorder %s38, %s41
      %p50 = scmp.eq.s32.totalorder %s19, 7
      %p51 = por %p49, %p50
      %p52 = scmp.ne.s32.totalorder %s41, %s42
      %p53 = scmp.eq.s32.totalorder %s19, 0
      %p54 = por %p52, %p53
      %p55 = scmp.ne.s32.totalorder %s41, %s42
      %p56 = scmp.eq.s32.totalorder %s20, 7
      %p57 = por %p55, %p56
      %p59 = scmp.ne.s32.totalorder %s42, %s58
      %p60 = scmp.eq.s32.totalorder %s20, 0
      %p61 = por %p59, %p60
      %s62 = ssub.s32 %s21, %s33
      %s63 = ssub.s32 %s22, %s29
      %s64 = sor.u32 %s62, %s63
      %p65 = scmp.eq.s32.totalorder %s64, 0
      %s67 = sadd.s32 %s66, 1
      %s68 = scalar_select %p65, %s66, %s67
      %p71 = pneg %p65
      %p72 = scmp.eq.s32.totalorder %s14, 7
      %p73 = por %p71, %p72
      %p74 = scmp.ne.s32.totalorder %s66, %s69
      %p75 = scmp.eq.s32.totalorder %s14, 0
      %p76 = por %p74, %p75
      %p77 = scmp.ne.s32.totalorder %s66, %s69
      %p78 = scmp.eq.s32.totalorder %s19, 7
      %p79 = por %p77, %p78
      %p80 = scmp.ne.s32.totalorder %s69, %s70
      %p81 = scmp.eq.s32.totalorder %s19, 0
      %p82 = por %p80, %p81
      %p83 = scmp.ne.s32.totalorder %s69, %s70
      %p84 = scmp.eq.s32.totalorder %s20, 7
      %p85 = por %p83, %p84
      %p87 = scmp.ne.s32.totalorder %s70, %s86
      %p88 = scmp.eq.s32.totalorder %s20, 0
      %p89 = por %p87, %p88
      %s91 = sadd.s32 %s90, 1
      %p94 = scmp.eq.s32.totalorder %s14, 7
      %p95 = scmp.ne.s32.totalorder %s90, %s92
      %p96 = scmp.eq.s32.totalorder %s14, 0
      %p97 = por %p95, %p96
      %p98 = scmp.ne.s32.totalorder %s90, %s92
      %p99 = scmp.eq.s32.totalorder %s19, 7
      %p100 = por %p98, %p99
      %p101 = scmp.ne.s32.totalorder %s92, %s93
      %p102 = scmp.eq.s32.totalorder %s19, 0
      %p103 = por %p101, %p102
      %p104 = scmp.ne.s32.totalorder %s92, %s93
      %p105 = scmp.eq.s32.totalorder %s20, 7
      %p106 = por %p104, %p105
      %p108 = scmp.ne.s32.totalorder %s93, %s107
      %p109 = scmp.eq.s32.totalorder %s20, 0
      %p110 = por %p108, %p109
      %s112 = sadd.s32 %s111, 1
      %p115 = scmp.eq.s32.totalorder %s14, 7
      %p116 = scmp.ne.s32.totalorder %s111, %s113
      %p117 = scmp.eq.s32.totalorder %s14, 0
      %p118 = por %p116, %p117
      %p119 = scmp.ne.s32.totalorder %s111, %s113
      %p120 = scmp.eq.s32.totalorder %s19, 7
      %p121 = por %p119, %p120
      %p122 = scmp.ne.s32.totalorder %s113, %s114
      %p123 = scmp.eq.s32.totalorder %s19, 0
      %p124 = por %p122, %p123
      %p125 = scmp.ne.s32.totalorder %s113, %s114
      %p126 = scmp.eq.s32.totalorder %s20, 7
      %p127 = por %p125, %p126
      %p129 = scmp.ne.s32.totalorder %s114, %s128
      %p130 = scmp.eq.s32.totalorder %s20, 0
      %p131 = por %p129, %p130
      %s133 = sadd.s32 %s132, 1
      %p136 = scmp.eq.s32.totalorder %s14, 7
      %p137 = scmp.ne.s32.totalorder %s132, %s134
      %p138 = scmp.eq.s32.totalorder %s14, 0
      %p139 = por %p137, %p138
      %p140 = scmp.ne.s32.totalorder %s132, %s134
      %p141 = scmp.eq.s32.totalorder %s19, 7
      %p142 = por %p140, %p141
      %p143 = scmp.ne.s32.totalorder %s134, %s135
      %p144 = scmp.eq.s32.totalorder %s19, 0
      %p145 = por %p143, %p144
      %p146 = scmp.ne.s32.totalorder %s134, %s135
      %p147 = scmp.eq.s32.totalorder %s20, 7
      %p148 = por %p146, %p147
      %p150 = scmp.ne.s32.totalorder %s135, %s149
      %p151 = scmp.eq.s32.totalorder %s20, 0
      %p152 = por %p150, %p151
      %s153 = ssub.s32 %s21, %s33
      %s154 = ssub.s32 %s22, %s29
      %s155 = sor.u32 %s153, %s154
      %p156 = scmp.eq.s32.totalorder %s155, 0
      %s158 = sadd.s32 %s157, 1
      %s159 = scalar_select %p156, %s157, %s158
      %p162 = pneg %p156
      %p163 = scmp.eq.s32.totalorder %s14, 7
      %p164 = por %p162, %p163
      %p165 = scmp.ne.s32.totalorder %s157, %s160
      %p166 = scmp.eq.s32.totalorder %s14, 0
      %p167 = por %p165, %p166
      %p168 = scmp.ne.s32.totalorder %s157, %s160
      %p169 = scmp.eq.s32.totalorder %s19, 7
      %p170 = por %p168, %p169
      %p171 = scmp.ne.s32.totalorder %s160, %s161
      %p172 = scmp.eq.s32.totalorder %s19, 0
      %p173 = por %p171, %p172
      %p174 = scmp.ne.s32.totalorder %s160, %s161
      %p175 = scmp.eq.s32.totalorder %s20, 7
      %p176 = por %p174, %p175
      %p178 = scmp.ne.s32.totalorder %s161, %s177
      %p179 = scmp.eq.s32.totalorder %s20, 0
      %p180 = por %p178, %p179
      %p181 = scmp.le.s32.totalorder 1, %s14
      %p182 = scmp.lt.s32.totalorder %s14, 9
      %p183 = pnand %p181, %p182
      %p184 = pneg %p183
      // Predicated region
      $region9: #{tpu_custom_call.1} parent=5 // pred_check
        _
      $region10: #{tpu_custom_call.1} parent=5 // pred_check_branch
        %186 = sbr.rel (%p183) target = $region12
      $region11: #{tpu_custom_call.1} parent=5 // pred_region
        %s187 = ssub.s32 %s14, 1
        // Predicated region
        $region13: #{tpu_custom_call.1} parent=11 // pred_check
          %p188 = pneg %p103
        $region14: #{tpu_custom_call.1} parent=11 // pred_check_branch
          %190 = sbr.rel (%p188) target = $region16
        $region15: #{tpu_custom_call.1} parent=11 // pred_region
          _
        $region16: #{tpu_custom_call.1} parent=11 // pred_fallthru
          _
        // Predicated region
        $region17: #{tpu_custom_call.1} parent=11 // pred_check
          %p191 = pneg %p124
        $region18: #{tpu_custom_call.1} parent=11 // pred_check_branch
          %193 = sbr.rel (%p191) target = $region20
        $region19: #{tpu_custom_call.1} parent=11 // pred_region
          _
        $region20: #{tpu_custom_call.1} parent=11 // pred_fallthru
          _
        // Predicated region
        $region21: #{tpu_custom_call.1} parent=11 // pred_check
          %p194 = pneg %p145
        $region22: #{tpu_custom_call.1} parent=11 // pred_check_branch
          %196 = sbr.rel (%p194) target = $region24
        $region23: #{tpu_custom_call.1} parent=11 // pred_region
          _
        $region24: #{tpu_custom_call.1} parent=11 // pred_fallthru
          _
      $region12: #{tpu_custom_call.1} parent=5 // pred_fallthru
        _
      %p197 = scmp.lt.s32.totalorder %s14, 8
      // Predicated region
      $region25: #{tpu_custom_call.1} parent=5 // pred_check
        %p198 = pneg %p197
      $region26: #{tpu_custom_call.1} parent=5 // pred_check_branch
        %200 = sbr.rel (%p198) target = $region28
      $region27: #{tpu_custom_call.1} parent=5 // pred_region
        // Predicated region
        $region29: #{tpu_custom_call.1} parent=27 // pred_check
          %p201 = pneg %p48
        $region30: #{tpu_custom_call.1} parent=27 // pred_check_branch
          %203 = sbr.rel (%p201) target = $region32
        $region31: #{tpu_custom_call.1} parent=27 // pred_region
          %p204 = scmp.lt.s32.totalorder %s21, 1
          %s205 = scalar_select %p204, %s21, 1
          %p206 = scmp.lt.s32.totalorder %s22, 3
          %s207 = scalar_select %p206, %s22, 3
          %s208 = smul.addr %s207, 24
          %s209 = smul.addr %s205, 96
          %s210 = sadd.s32 %s208, %s209
          %s211 = smul.addr %s210, 8
          %s212 = scalar_lea.vmem %s0, %s211
        $region32: #{tpu_custom_call.1} parent=27 // pred_fallthru
          _
        // Predicated region
        $region33: #{tpu_custom_call.1} parent=27 // pred_check
          %p213 = pneg %p76
        $region34: #{tpu_custom_call.1} parent=27 // pred_check_branch
          %215 = sbr.rel (%p213) target = $region36
        $region35: #{tpu_custom_call.1} parent=27 // pred_region
          %p216 = scmp.lt.s32.totalorder %s21, 1
          %s217 = scalar_select %p216, %s21, 1
          %p218 = scmp.lt.s32.totalorder %s22, 3
          %s219 = scalar_select %p218, %s22, 3
          %s220 = smul.addr %s217, 4
          %s221 = sadd.s32 %s219, %s220
          %s222 = smul.addr %s221, 8
          %s223 = scalar_lea.vmem %s1, %s222
        $region36: #{tpu_custom_call.1} parent=27 // pred_fallthru
          _
      $region28: #{tpu_custom_call.1} parent=5 // pred_fallthru
        _
      %p224 = scmp.le.s32.totalorder 1, %s14
      %p225 = scmp.lt.s32.totalorder %s14, 9
      %p226 = pnand %p224, %p225
      %p227 = pneg %p226
      // Predicated region
      $region37: #{tpu_custom_call.1} parent=5 // pred_check
        _
      $region38: #{tpu_custom_call.1} parent=5 // pred_check_branch
        %229 = sbr.rel (%p226) target = $region40
      $region39: #{tpu_custom_call.1} parent=5 // pred_region
        %s230 = ssub.s32 %s14, 1
        %p231 = scmp.lt.s32.totalorder %s23, 1
        %s232 = scalar_select %p231, %s23, 1
        %p233 = scmp.lt.s32.totalorder %s24, 3
        %s234 = scalar_select %p233, %s24, 3
        %s235 = smul.addr %s234, 24
        %s236 = smul.addr %s232, 96
        %s237 = sadd.s32 %s235, %s236
        %s238 = smul.addr %s237, 8
        %s239 = scalar_lea.vmem %s0, %s238
        %p240 = pneg %p54
        %p241 = pneg %p51
        %p242 = scmp.lt.s32.totalorder %s23, 1
        %s243 = scalar_select %p242, %s23, 1
        %p244 = scmp.lt.s32.totalorder %s24, 3
        %s245 = scalar_select %p244, %s24, 3
        %s246 = smul.addr %s243, 4
        %s247 = sadd.s32 %s245, %s246
        %s248 = smul.addr %s247, 8
        %s249 = scalar_lea.vmem %s1, %s248
        %p250 = pneg %p82
        %p251 = pneg %p79
        %p252 = pneg %p103
        %p253 = pneg %p100
        %p254 = pneg %p124
        %p255 = pneg %p121
        %p256 = pneg %p145
        %p257 = pneg %p142
        %p258 = pneg %p173
        %p259 = pneg %p170
        %s260 = sand.u32 %s160, 1
        %s261 = scalar_lea.sflag [#allocation3], %s260
        %s262 = sand.u32 %s160, 1
        %s263 = smul.addr %s262, 8
        %s264 = scalar_lea.vmem [#allocation2], %s263
        %p265 = scmp.lt.s32.totalorder %s23, 1
        %s266 = scalar_select %p265, %s23, 1
        %p267 = scmp.lt.s32.totalorder %s24, 3
        %s268 = scalar_select %p267, %s24, 3
        %s269 = smul.addr %s268, 24
        %s270 = smul.addr %s266, 96
        %s271 = sadd.s32 %s269, %s270
        %s272 = smul.addr %s271, 8
        %s273 = scalar_lea.vmem %s0, %s272
        %p274 = scmp.lt.s32.totalorder %s23, 1
        %s275 = scalar_select %p274, %s23, 1
        %p276 = scmp.lt.s32.totalorder %s24, 3
        %s277 = scalar_select %p276, %s24, 3
        %s278 = smul.addr %s275, 4
        %s279 = sadd.s32 %s277, %s278
        %s280 = smul.addr %s279, 8
        %s281 = scalar_lea.vmem %s1, %s280
        %v282 = vld [vmem:[%s273] sm:$0xff]
        %v283 = vld [vmem:[%s273 + $0x8] sm:$0xff]
        %v284 = vld [vmem:[%s273 + $0x10] sm:$0xff]
        %v285 = vld [vmem:[%s273 + $0x18] sm:$0xff]
        %v286 = vld [vmem:[%s273 + $0x20] sm:$0xff]
        %v287 = vld [vmem:[%s273 + $0x28] sm:$0xff]
        %v288 = vld [vmem:[%s273 + $0x30] sm:$0xff]
        %v289 = vld [vmem:[%s273 + $0x38] sm:$0xff]
        %v290 = vld [vmem:[%s273 + $0x40] sm:$0xff]
        %v291 = vld [vmem:[%s273 + $0x48] sm:$0xff]
        %v292 = vld [vmem:[%s273 + $0x50] sm:$0xff]
        %v293 = vld [vmem:[%s273 + $0x58] sm:$0xff]
        %v294 = vld [vmem:[%s273 + $0x60] sm:$0xff]
        %v295 = vld [vmem:[%s273 + $0x68] sm:$0xff]
        %v296 = vld [vmem:[%s273 + $0x70] sm:$0xff]
        %v297 = vld [vmem:[%s273 + $0x78] sm:$0xff]
        %v298 = vld [vmem:[%s273 + $0x80] sm:$0xff]
        %v299 = vld [vmem:[%s273 + $0x88] sm:$0xff]
        %v300 = vld [vmem:[%s273 + $0x90] sm:$0xff]
        %v301 = vld [vmem:[%s273 + $0x98] sm:$0xff]
        %v302 = vld [vmem:[%s273 + $0xa0] sm:$0xff]
        %v303 = vld [vmem:[%s273 + $0xa8] sm:$0xff]
        %v304 = vld [vmem:[%s273 + $0xb0] sm:$0xff]
        %v305 = vld [vmem:[%s273 + $0xb8] sm:$0xff]
        %v306 = vld [vmem:[%s2] sm:$0x1f]
        %vm307 = vcmask 39936
        %v309 = vsel %vm307, %v282, 0
        %v312 = vsel %vm307, %v283, 0
        %v315 = vsel %vm307, %v284, 0
        %v318 = vsel %vm307, %v285, 0
        %v321 = vsel %vm307, %v286, 0
        %v324 = vsel %vm307, %v287, 0
        %v327 = vsel %vm307, %v288, 0
        %v330 = vsel %vm307, %v289, 0
        %v333 = vsel %vm307, %v290, 0
        %v336 = vsel %vm307, %v291, 0
        %v339 = vsel %vm307, %v292, 0
        %v342 = vsel %vm307, %v293, 0
        %v345 = vsel %vm307, %v294, 0
        %v348 = vsel %vm307, %v295, 0
        %v351 = vsel %vm307, %v296, 0
        %v354 = vsel %vm307, %v297, 0
        %v357 = vsel %vm307, %v298, 0
        %v360 = vsel %vm307, %v299, 0
        %v363 = vsel %vm307, %v300, 0
        %v366 = vsel %vm307, %v301, 0
        %v369 = vsel %vm307, %v302, 0
        %v372 = vsel %vm307, %v303, 0
        %v375 = vsel %vm307, %v304, 0
        %v378 = vsel %vm307, %v305, 0
        %vm380 = vcmask 1044480
        %v382 = vsel %vm380, %v306, 0
        %384 = vmatprep.subr.mxu0 0.0
        %385 = vmatpush1.msra.mxu0 %v382
        %386 = vmatprep.subr.mxu0 0.0
        %387 = vmatpush1.msra.mxu0 0.0
        %388 = vmatprep.subr.mxu0 0.0
        %389 = vmatpush1.msra.mxu0 0.0
        %390 = vmatprep.subr.mxu0 0.0
        %391 = vmatpush1.msra.mxu0 0.0
        %392 = vmatprep.subr.mxu0 0.0
        %393 = vmatpush1.msra.mxu0 0.0
        %394 = vmatprep.subr.mxu0 0.0
        %395 = vmatpush1.msra.mxu0 0.0
        %396 = vmatprep.subr.mxu0 0.0
        %397 = vmatpush1.msra.mxu0 0.0
        %398 = vmatprep.subr.mxu0 0.0
        %399 = vmatpush1.msra.mxu0 0.0
        %400 = vmatprep.subr.mxu0 0.0
        %401 = vmatpush1.msra.mxu0 0.0
        %402 = vmatprep.subr.mxu0 0.0
        %403 = vmatpush1.msra.mxu0 0.0
        %404 = vmatprep.subr.mxu0 0.0
        %405 = vmatpush1.msra.mxu0 0.0
        %406 = vmatprep.subr.mxu0 0.0
        %407 = vmatpush1.msra.mxu0 0.0
        %408 = vmatprep.subr.mxu0 0.0
        %409 = vmatpush1.msra.mxu0 0.0
        %410 = vmatprep.subr.mxu0 0.0
        %411 = vmatpush1.msra.mxu0 0.0
        %412 = vmatprep.subr.mxu0 0.0
        %413 = vmatpush1.msra.mxu0 0.0
        %414 = vmatprep.subr.mxu0 0.0
        %415 = vmatpush1.msra.mxu0 0.0
        %416 = vmatprep.subr.mxu0 0.0
        %417 = vmatpush1.msra.mxu0 0.0
        %418 = vmatprep.subr.mxu0 0.0
        %419 = vmatpush1.msra.mxu0 0.0
        %420 = vmatprep.subr.mxu0 0.0
        %421 = vmatpush1.msra.mxu0 0.0
        %422 = vmatprep.subr.mxu0 0.0
        %423 = vmatpush1.msra.mxu0 0.0
        %424 = vmatprep.subr.mxu0 0.0
        %425 = vmatpush1.msra.mxu0 0.0
        %426 = vmatprep.subr.mxu0 0.0
        %427 = vmatpush1.msra.mxu0 0.0
        %428 = vmatprep.subr.mxu0 0.0
        %429 = vmatpush1.msra.mxu0 0.0
        %430 = vmatprep.subr.mxu0 0.0
        %431 = vmatpush1.msra.mxu0 0.0
        %432 = vmatprep.subr.mxu0 0.0
        %433 = vmatpush1.msra.mxu0 0.0
        %434 = vmatprep.subr.mxu0 0.0
        %435 = vmatpush1.msra.mxu0 0.0
        %436 = vmatprep.subr.mxu0 0.0
        %437 = vmatpush1.msra.mxu0 0.0
        %438 = vmatprep.subr.mxu0 0.0
        %439 = vmatpush1.msra.mxu0 0.0
        %440 = vmatprep.subr.mxu0 0.0
        %441 = vmatpush1.msra.mxu0 0.0
        %442 = vmatprep.subr.mxu0 0.0
        %443 = vmatpush1.msra.mxu0 0.0
        %444 = vmatprep.subr.mxu0 0.0
        %445 = vmatpush1.msra.mxu0 0.0
        %446 = vmatprep.subr.mxu0 0.0
        %447 = vmatpush1.msra.mxu0 0.0
        %448 = vmatprep.mubr.f32.mxu0 0.0
        %449 = vmatmul.mubr.f32.gmra.mrb[0].mxu0 %v309
        %v450 = vpop.f32.mrb[0].mxu0
        %v451 = vadd.f32 0.0, %v450
        %v452 = vpop.f32.mrb[0].mxu0
        %453 = vmatprep.mubr.f32.mxu0 0.0
        %454 = vmatmul.mubr.f32.gmra.mrb[0].mxu0 %v312
        %v455 = vpop.f32.mrb[0].mxu0
        %v456 = vadd.f32 0.0, %v455
        %v457 = vpop.f32.mrb[0].mxu0
        %458 = vmatprep.mubr.f32.mxu0 0.0
        %459 = vmatmul.mubr.f32.gmra.mrb[0].mxu0 %v315
        %v460 = vpop.f32.mrb[0].mxu0
        %v461 = vadd.f32 0.0, %v460
        %v462 = vpop.f32.mrb[0].mxu0
        %463 = vmatprep.mubr.f32.mxu0 0.0
        %464 = vmatmul.mubr.f32.gmra.mrb[0].mxu0 %v318
        %v465 = vpop.f32.mrb[0].mxu0
        %v466 = vadd.f32 0.0, %v465
        %v467 = vpop.f32.mrb[0].mxu0
        %468 = vmatprep.mubr.f32.mxu0 0.0
        %469 = vmatmul.mubr.f32.gmra.mrb[0].mxu0 %v321
        %v470 = vpop.f32.mrb[0].mxu0
        %v471 = vadd.f32 0.0, %v470
        %v472 = vpop.f32.mrb[0].mxu0
        %473 = vmatprep.mubr.f32.mxu0 0.0
        %474 = vmatmul.mubr.f32.gmra.mrb[0].mxu0 %v324
        %v475 = vpop.f32.mrb[0].mxu0
        %v476 = vadd.f32 0.0, %v475
        %v477 = vpop.f32.mrb[0].mxu0
        %478 = vmatprep.mubr.f32.mxu0 0.0
        %479 = vmatmul.mubr.f32.gmra.mrb[0].mxu0 %v327
        %v480 = vpop.f32.mrb[0].mxu0
        %v481 = vadd.f32 0.0, %v480
        %v482 = vpop.f32.mrb[0].mxu0
        %483 = vmatprep.mubr.f32.mxu0 0.0
        %484 = vmatmul.mubr.f32.gmra.mrb[0].mxu0 %v330
        %v485 = vpop.f32.mrb[0].mxu0
        %v486 = vadd.f32 0.0, %v485
        %v487 = vpop.f32.mrb[0].mxu0
        %488 = vmatprep.mubr.f32.mxu0 0.0
        %489 = vmatmul.mubr.f32.gmra.mrb[0].mxu0 %v333
        %v490 = vpop.f32.mrb[0].mxu0
        %v491 = vadd.f32 0.0, %v490
        %v492 = vpop.f32.mrb[0].mxu0
        %493 = vmatprep.mubr.f32.mxu0 0.0
        %494 = vmatmul.mubr.f32.gmra.mrb[0].mxu0 %v336
        %v495 = vpop.f32.mrb[0].mxu0
        %v496 = vadd.f32 0.0, %v495
        %v497 = vpop.f32.mrb[0].mxu0
        %498 = vmatprep.mubr.f32.mxu0 0.0
        %499 = vmatmul.mubr.f32.gmra.mrb[0].mxu0 %v339
        %v500 = vpop.f32.mrb[0].mxu0
        %v501 = vadd.f32 0.0, %v500
        %v502 = vpop.f32.mrb[0].mxu0
        %503 = vmatprep.mubr.f32.mxu0 0.0
        %504 = vmatmul.mubr.f32.gmra.mrb[0].mxu0 %v342
        %v505 = vpop.f32.mrb[0].mxu0
        %v506 = vadd.f32 0.0, %v505
        %v507 = vpop.f32.mrb[0].mxu0
        %508 = vmatprep.mubr.f32.mxu0 0.0
        %509 = vmatmul.mubr.f32.gmra.mrb[0].mxu0 %v345
        %v510 = vpop.f32.mrb[0].mxu0
        %v511 = vadd.f32 0.0, %v510
        %v512 = vpop.f32.mrb[0].mxu0
        %513 = vmatprep.mubr.f32.mxu0 0.0
        %514 = vmatmul.mubr.f32.gmra.mrb[0].mxu0 %v348
        %v515 = vpop.f32.mrb[0].mxu0
        %v516 = vadd.f32 0.0, %v515
        %v517 = vpop.f32.mrb[0].mxu0
        %518 = vmatprep.mubr.f32.mxu0 0.0
        %519 = vmatmul.mubr.f32.gmra.mrb[0].mxu0 %v351
        %v520 = vpop.f32.mrb[0].mxu0
        %v521 = vadd.f32 0.0, %v520
        %v522 = vpop.f32.mrb[0].mxu0
        %523 = vmatprep.mubr.f32.mxu0 0.0
        %524 = vmatmul.mubr.f32.gmra.mrb[0].mxu0 %v354
        %v525 = vpop.f32.mrb[0].mxu0
        %v526 = vadd.f32 0.0, %v525
        %v527 = vpop.f32.mrb[0].mxu0
        %528 = vmatprep.mubr.f32.mxu0 0.0
        %529 = vmatmul.mubr.f32.gmra.mrb[0].mxu0 %v357
        %v530 = vpop.f32.mrb[0].mxu0
        %v531 = vadd.f32 0.0, %v530
        %v532 = vpop.f32.mrb[0].mxu0
        %533 = vmatprep.mubr.f32.mxu0 0.0
        %534 = vmatmul.mubr.f32.gmra.mrb[0].mxu0 %v360
        %v535 = vpop.f32.mrb[0].mxu0
        %v536 = vadd.f32 0.0, %v535
        %v537 = vpop.f32.mrb[0].mxu0
        %538 = vmatprep.mubr.f32.mxu0 0.0
        %539 = vmatmul.mubr.f32.gmra.mrb[0].mxu0 %v363
        %v540 = vpop.f32.mrb[0].mxu0
        %v541 = vadd.f32 0.0, %v540
        %v542 = vpop.f32.mrb[0].mxu0
        %543 = vmatprep.mubr.f32.mxu0 0.0
        %544 = vmatmul.mubr.f32.gmra.mrb[0].mxu0 %v366
        %v545 = vpop.f32.mrb[0].mxu0
        %v546 = vadd.f32 0.0, %v545
        %v547 = vpop.f32.mrb[0].mxu0
        %548 = vmatprep.mubr.f32.mxu0 0.0
        %549 = vmatmul.mubr.f32.gmra.mrb[0].mxu0 %v369
        %v550 = vpop.f32.mrb[0].mxu0
        %v551 = vadd.f32 0.0, %v550
        %v552 = vpop.f32.mrb[0].mxu0
        %553 = vmatprep.mubr.f32.mxu0 0.0
        %554 = vmatmul.mubr.f32.gmra.mrb[0].mxu0 %v372
        %v555 = vpop.f32.mrb[0].mxu0
        %v556 = vadd.f32 0.0, %v555
        %v557 = vpop.f32.mrb[0].mxu0
        %558 = vmatprep.mubr.f32.mxu0 0.0
        %559 = vmatmul.mubr.f32.gmra.mrb[0].mxu0 %v375
        %v560 = vpop.f32.mrb[0].mxu0
        %v561 = vadd.f32 0.0, %v560
        %v562 = vpop.f32.mrb[0].mxu0
        %563 = vmatprep.mubr.f32.mxu0 0.0
        %564 = vmatmul.mubr.f32.gmra.mrb[0].mxu0 %v378
        %v565 = vpop.f32.mrb[0].mxu0
        %v566 = vadd.f32 0.0, %v565
        %v567 = vpop.f32.mrb[0].mxu0
        %568 = vdwg.mxu0
        %v569 = vmax.f32 %v451, %v471
        %v570 = vmax.f32 %v456, %v476
        %v571 = vmax.f32 %v461, %v481
        %v572 = vmax.f32 %v466, %v486
        %v573 = vmax.f32 %v569, %v491
        %v574 = vmax.f32 %v570, %v496
        %v575 = vmax.f32 %v571, %v501
        %v576 = vmax.f32 %v572, %v506
        %v577 = vmax.f32 %v573, %v511
        %v578 = vmax.f32 %v574, %v516
        %v579 = vmax.f32 %v575, %v521
        %v580 = vmax.f32 %v576, %v526
        %v581 = vmax.f32 %v577, %v531
        %v582 = vmax.f32 %v578, %v536
        %v583 = vmax.f32 %v579, %v541
        %v584 = vmax.f32 %v580, %v546
        %v585 = vmax.f32 %v581, %v551
        %v586 = vmax.f32 %v582, %v556
        %v587 = vmax.f32 %v583, %v561
        %v588 = vmax.f32 %v584, %v566
        %v589 = vmax.f32 %v585, %v586
        %v590 = vmax.f32 %v587, %v588
        %v591 = vmax.f32 %v589, %v590
        %v592 = vld [vmem:[%s281] sm:$0xff]
        %v593 = vld [vmem:[%s3] sm:$0xf]
        %vm594 = vcmask 31744
        %v596 = vsel %vm594, %v592, 0
        %vm598 = vcmask 1043456
        %v600 = vsel %vm598, %v593, 0
        %602 = vmatprep.subr.mxu0 0.0
        %603 = vmatpush1.msra.mxu0 %v600
        %604 = vmatprep.subr.mxu0 0.0
        %605 = vmatpush1.msra.mxu0 0.0
        %606 = vmatprep.subr.mxu0 0.0
        %607 = vmatpush1.msra.mxu0 0.0
        %608 = vmatprep.subr.mxu0 0.0
        %609 = vmatpush1.msra.mxu0 0.0
        %610 = vmatprep.subr.mxu0 0.0
        %611 = vmatpush1.msra.mxu0 0.0
        %612 = vmatprep.subr.mxu0 0.0
        %613 = vmatpush1.msra.mxu0 0.0
        %614 = vmatprep.subr.mxu0 0.0
        %615 = vmatpush1.msra.mxu0 0.0
        %616 = vmatprep.subr.mxu0 0.0
        %617 = vmatpush1.msra.mxu0 0.0
        %618 = vmatprep.subr.mxu0 0.0
        %619 = vmatpush1.msra.mxu0 0.0
        %620 = vmatprep.subr.mxu0 0.0
        %621 = vmatpush1.msra.mxu0 0.0
        %622 = vmatprep.subr.mxu0 0.0
        %623 = vmatpush1.msra.mxu0 0.0
        %624 = vmatprep.subr.mxu0 0.0
        %625 = vmatpush1.msra.mxu0 0.0
        %626 = vmatprep.subr.mxu0 0.0
        %627 = vmatpush1.msra.mxu0 0.0
        %628 = vmatprep.subr.mxu0 0.0
        %629 = vmatpush1.msra.mxu0 0.0
        %630 = vmatprep.subr.mxu0 0.0
        %631 = vmatpush1.msra.mxu0 0.0
        %632 = vmatprep.subr.mxu0 0.0
        %633 = vmatpush1.msra.mxu0 0.0
        %634 = vmatprep.subr.mxu0 0.0
        %635 = vmatpush1.msra.mxu0 0.0
        %636 = vmatprep.subr.mxu0 0.0
        %637 = vmatpush1.msra.mxu0 0.0
        %638 = vmatprep.subr.mxu0 0.0
        %639 = vmatpush1.msra.mxu0 0.0
        %640 = vmatprep.subr.mxu0 0.0
        %641 = vmatpush1.msra.mxu0 0.0
        %642 = vmatprep.subr.mxu0 0.0
        %643 = vmatpush1.msra.mxu0 0.0
        %644 = vmatprep.subr.mxu0 0.0
        %645 = vmatpush1.msra.mxu0 0.0
        %646 = vmatprep.subr.mxu0 0.0
        %647 = vmatpush1.msra.mxu0 0.0
        %648 = vmatprep.subr.mxu0 0.0
        %649 = vmatpush1.msra.mxu0 0.0
        %650 = vmatprep.subr.mxu0 0.0
        %651 = vmatpush1.msra.mxu0 0.0
        %652 = vmatprep.subr.mxu0 0.0
        %653 = vmatpush1.msra.mxu0 0.0
        %654 = vmatprep.subr.mxu0 0.0
        %655 = vmatpush1.msra.mxu0 0.0
        %656 = vmatprep.subr.mxu0 0.0
        %657 = vmatpush1.msra.mxu0 0.0
        %658 = vmatprep.subr.mxu0 0.0
        %659 = vmatpush1.msra.mxu0 0.0
        %660 = vmatprep.subr.mxu0 0.0
        %661 = vmatpush1.msra.mxu0 0.0
        %662 = vmatprep.subr.mxu0 0.0
        %663 = vmatpush1.msra.mxu0 0.0
        %664 = vmatprep.subr.mxu0 0.0
        %665 = vmatpush1.msra.mxu0 0.0
        %666 = vmatprep.mubr.f32.mxu0 0.0
        %667 = vmatmul.mubr.f32.gmra.mrb[0].mxu0 %v596
        %v668 = vpop.f32.mrb[0].mxu0
        %v669 = vadd.f32 0.0, %v668
        %v670 = vpop.f32.mrb[0].mxu0
        %671 = vdwg.mxu0
        %v672 = vadd.f32 %v591, %v669
        %v673 = vld [vmem:[%s4] sm:$0x1]
        %v675 = vlaneseq
        %v676 = vshrl.u32 %v675, 7
        %v677 = vsub.s32 0, %v676
        %v678 = vrot.slane %v673, %v677
        %v680 = vadd.f32 %v672, %v678
        %v681 = vmax.f32 %v680, 0.0
        %682 = vst [vmem:[%s264] sm:$0xff] %v681
        %s683 = sand.u32 %s160, 1
        %s684 = scalar_lea.sflag [#allocation3], %s683
        %s685 = sand.u32 %s160, 1
        %s686 = smul.addr %s685, 8
        %s687 = scalar_lea.vmem [#allocation2], %s686
        // Predicated region
        $region41: #{tpu_custom_call.1} parent=39 // pred_check
          %p688 = pneg %p170
        $region42: #{tpu_custom_call.1} parent=39 // pred_check_branch
          %690 = sbr.rel (%p688) target = $region44
        $region43: #{tpu_custom_call.1} parent=39 // pred_region
          %s692 = ssub.s32 128, 128
          %693 = vsyncadd %s684, %s692
          %s694 = smul.addr %s23, 4
          %s695 = sadd.s32 %s24, %s694
          %s696 = smul.addr %s695, 128
          %s697 = scalar_lea.hbm %s5, %s696
          %s699 = sshll.u32 %s687, 4
          %s700 = int_to_ptr.vmem [resolvable:$true] %s699
          %702 = dma.vmem_to_hbm [thread:$0]  %s700, 128, %s697, %s684
        $region44: #{tpu_custom_call.1} parent=39 // pred_fallthru
          _
      $region40: #{tpu_custom_call.1} parent=5 // pred_fallthru
        _
      %p703 = scmp.le.s32.totalorder 2, %s14
      // Predicated region
      $region45: #{tpu_custom_call.1} parent=5 // pred_check
        %p704 = pneg %p703
      $region46: #{tpu_custom_call.1} parent=5 // pred_check_branch
        %706 = sbr.rel (%p704) target = $region48
      $region47: #{tpu_custom_call.1} parent=5 // pred_region
        %s707 = ssub.s32 %s14, 2
        // Predicated region
        $region49: #{tpu_custom_call.1} parent=47 // pred_check
          %p708 = pneg %p176
        $region50: #{tpu_custom_call.1} parent=47 // pred_check_branch
          %710 = sbr.rel (%p708) target = $region52
        $region51: #{tpu_custom_call.1} parent=47 // pred_region
          %s711 = sand.u32 %s161, 1
          %s712 = scalar_lea.sflag [#allocation3], %s711
          %s713 = sand.u32 %s161, 1
          %s714 = smul.addr %s713, 8
          %s715 = scalar_lea.vmem [#allocation2], %s714
          %716 = dma.done %s712, 128
        $region52: #{tpu_custom_call.1} parent=47 // pred_fallthru
          _
      $region48: #{tpu_custom_call.1} parent=5 // pred_fallthru
        _
    $region6: #{tpu_custom_call.1} parent=1 // loop_footer
      %s18 = sadd.s32 1, %s14
    $region7: #{tpu_custom_call.1} parent=1 // loop_footer_branch
      %13 = sbr.rel target = $region3
    $region8: #{tpu_custom_call.1} parent=1 // loop_exit
      _
    %717 = vsyncpa [#allocation3], 1
    %s718 = scalar_lea.sflag [#allocation3], 1
    %719 = vsyncpa %s718, 1

</llo_original>
